<compile_context>
chip_gen: v7x
topology: tpu7x:2x2x1
jax: 0.10.0
libtpu: 0.0.40
codegen_flags: <defaults>
</compile_context>

<pallas_src>
import functools

import jax
import jax.numpy as jnp
from jax.experimental import pallas as pl
from jax.experimental.pallas import tpu as pltpu

_MIB = 1024 * 1024


def _round_up(x, m):
    return ((x + m - 1) // m) * m


def _detect_generation():
    try:
        kind = jax.devices()[0].device_kind.lower()
    except Exception:
        return "unknown"
    if "v5 lite" in kind or "v5e" in kind or "v5litepod" in kind:
        return "v5e"
    if "v6" in kind:
        return "v6e"
    if "v7" in kind or "7x" in kind:
        return "v7x"
    return "unknown"


def _physical_vmem_bytes(gen):
    # Per-TensorCore VMEM: v7x has 64 MiB, v5e/v6e (and default) 128 MiB.
    return 64 * _MIB if gen == "v7x" else 128 * _MIB


def _choose_ti(I):
    # Prefer tile sizes that divide I exactly (no weight padding needed).
    for cand in (256, 128):
        if I % cand == 0:
            return cand
    return min(256, _round_up(I, 128))


def _vmem_budget_bytes(tm, ti, H, out_itemsize):
    b = 2  # bf16 streams
    x_b = 2 * tm * H * b                     # double-buffered activation tile
    wgu_b = 2 * H * (2 * ti) * b             # double-buffered fused gate|up slice
    wd_b = 2 * ti * H * b                    # double-buffered down slice
    out_b = 2 * tm * H * out_itemsize        # double-buffered output tile
    acc_b = tm * H * 4                       # resident f32 accumulator
    interm = tm * (2 * ti) * 4 + tm * ti * 4  # gu (f32) + y intermediates
    return x_b + wgu_b + wd_b + out_b + acc_b + interm


# --------------------------------------------------------------------------
# Kernel
# --------------------------------------------------------------------------
def _llama_mlp_kernel(x_ref, wgu_ref, wd_ref, o_ref, acc_ref, *, ti):
    j = pl.program_id(1)

    @pl.when(j == 0)
    def _():
        acc_ref[...] = jnp.zeros_like(acc_ref)

    x = x_ref[...]            # (tm, H)       bf16
    wgu = wgu_ref[...]        # (H, 2*ti)     bf16  [gate_tile | up_tile]
    wd = wd_ref[...]          # (ti, H)       bf16

    # Fused gate/up projection for this intermediate slice (f32 accumulation).
    gu = jnp.dot(x, wgu, preferred_element_type=jnp.float32)   # (tm, 2*ti)
    g = gu[:, :ti]
    u = gu[:, ti:]

    # SiLU(gate) * up in f32 (sigmoid goes to the EUP slot).
    y = jax.nn.silu(g) * u                                      # (tm, ti) f32

    # Partial down projection, accumulated over intermediate tiles.
    acc = acc_ref[...] + jnp.dot(y.astype(wd.dtype), wd,
                                 preferred_element_type=jnp.float32)
    acc_ref[...] = acc

    @pl.when(j == pl.num_programs(1) - 1)
    def _():
        o_ref[...] = acc.astype(o_ref.dtype)


# --------------------------------------------------------------------------
# One-time weight preparation (call at weight-load time, not per forward).
# --------------------------------------------------------------------------
def prepare_llama_mlp_weights(w_gate, w_up, w_down, *, ti=None,
                              compute_dtype=jnp.bfloat16):
    """w_gate/w_up: (I, H); w_down: (H, I)  (nn.Linear layout).

    Returns (wgu, wd_t, ti, I_pad):
      wgu : (H, (I_pad//ti) * 2*ti)  per-tile interleaved [gate_j | up_j]
      wd_t: (I_pad, H)
    """
    I, H = w_gate.shape
    if ti is None:
        ti = _choose_ti(I)
    I_pad = _round_up(I, ti)

    wg_t = w_gate.T.astype(compute_dtype)   # (H, I)
    wu_t = w_up.T.astype(compute_dtype)     # (H, I)
    wd_t = w_down.T.astype(compute_dtype)   # (I, H)

    # Zero-padding is exact: padded intermediate columns give g = u = 0, and
    # silu(0)*0 = 0 contributes nothing to the down projection.
    if I_pad != I:
        pad = I_pad - I
        wg_t = jnp.pad(wg_t, ((0, 0), (0, pad)))
        wu_t = jnp.pad(wu_t, ((0, 0), (0, pad)))
        wd_t = jnp.pad(wd_t, ((0, pad), (0, 0)))

    nt = I_pad // ti
    # Interleave per tile so one (H, 2*ti) block j == [gate tile j | up tile j].
    wgu = jnp.concatenate(
        [wg_t.reshape(H, nt, ti), wu_t.reshape(H, nt, ti)], axis=2
    ).reshape(H, nt * 2 * ti)
    return wgu, wd_t, ti, I_pad


# --------------------------------------------------------------------------
# Hot-path forward with pre-prepared weights.
# --------------------------------------------------------------------------
def llama_mlp_prepared(x, wgu, wd_t, ti, *, tm=None, vmem_limit_bytes=None,
                       compute_dtype=jnp.bfloat16):
    B, S, H = x.shape
    I_pad = wd_t.shape[0]
    nt = I_pad // ti
    M = B * S
    out_dtype = x.dtype
    out_itemsize = jnp.dtype(out_dtype).itemsize

    gen = _detect_generation()

    # --- token tile choice (generation aware) --------------------------------
    if tm is None:
        if gen == "v6e":
            tm = 1024 if H <= 4096 else 512
        else:  # v5e, v7x, unknown
            tm = 512
    m_cap = _round_up(M, 16)
    if gen == "v7x" and M > 16:
        # Ensure >= 2 token blocks so the "parallel" axis shards over both TCs.
        m_cap = max(16, _round_up((M + 1) // 2, 16))
    tm = _round_up(max(16, min(tm, m_cap)), 16)

    # --- VMEM budget / limit --------------------------------------------------
    phys = _physical_vmem_bytes(gen)
    cap = phys - 8 * _MIB  # headroom for compiler-internal scratch
    while _vmem_budget_bytes(tm, ti, H, out_itemsize) > cap and tm > 256:
        tm = _round_up(max(256, tm // 2), 16)
    if vmem_limit_bytes is None:
        need = _vmem_budget_bytes(tm, ti, H, out_itemsize) + 16 * _MIB
        vmem_limit_bytes = int(min(cap, max(need, 32 * _MIB)))

    M_pad = _round_up(M, tm)

    x2d = x.reshape(M, H).astype(compute_dtype)
    if M_pad != M:
        x2d = jnp.pad(x2d, ((0, M_pad - M), (0, 0)))

    grid = (M_pad // tm, nt)

    out2d = pl.pallas_call(
        functools.partial(_llama_mlp_kernel, ti=ti),
        out_shape=jax.ShapeDtypeStruct((M_pad, H), out_dtype),
        grid_spec=pltpu.PrefetchScalarGridSpec(
            num_scalar_prefetch=0,
            grid=grid,
            in_specs=[
                pl.BlockSpec((tm, H), lambda i, j: (i, 0)),        # x tile
                pl.BlockSpec((H, 2 * ti), lambda i, j: (0, j)),    # [gate|up] slice
                pl.BlockSpec((ti, H), lambda i, j: (j, 0)),        # down slice
            ],
            out_specs=pl.BlockSpec((tm, H), lambda i, j: (i, 0)),
            scratch_shapes=[pltpu.VMEM((tm, H), jnp.float32)],
        ),
        compiler_params=pltpu.CompilerParams(
            dimension_semantics=("parallel", "arbitrary"),
            vmem_limit_bytes=vmem_limit_bytes,
        ),
    )(x2d, wgu, wd_t)

    return out2d[:M].reshape(B, S, H)


# --------------------------------------------------------------------------
# Convenience wrapper (prepares weights inline — fine for a one-off call;
# for training / serving, call prepare_llama_mlp_weights once and reuse).
# --------------------------------------------------------------------------
def llama_mlp(x, w_gate, w_up, w_down, *, tm=None, ti=None,
              compute_dtype=jnp.bfloat16, vmem_limit_bytes=None):
    wgu, wd_t, ti, _ = prepare_llama_mlp_weights(
        w_gate, w_up, w_down, ti=ti, compute_dtype=compute_dtype)
    return llama_mlp_prepared(x, wgu, wd_t, ti, tm=tm,
                              vmem_limit_bytes=vmem_limit_bytes,
                              compute_dtype=compute_dtype)


def reference_mlp(x, w_gate, w_up, w_down, compute_dtype=jnp.bfloat16):
    """f32 reference on the same bf16-rounded operands as the kernel."""
    f32 = jnp.float32
    xb = x.astype(compute_dtype).astype(f32)
    wg = w_gate.astype(compute_dtype).astype(f32)
    wu = w_up.astype(compute_dtype).astype(f32)
    wd = w_down.astype(compute_dtype).astype(f32)
    g = xb @ wg.T
    u = xb @ wu.T
    y = (jax.nn.silu(g) * u).astype(compute_dtype).astype(f32)
    return (y @ wd.T).astype(x.dtype)


if __name__ == "__main__":
    # Small, deterministic config (exercises ragged M and a ti=128 split):
    # hidden=256, intermediate=384, 2x7 tokens.
    B, S, H, I = 2, 7, 256, 384

    key = jax.random.PRNGKey(0)
    kx, kg, ku, kd = jax.random.split(key, 4)

    x = jax.random.normal(kx, (B, S, H), dtype=jnp.float32)
    w_gate = jax.random.normal(kg, (I, H), dtype=jnp.float32) * (1.0 / H ** 0.5)
    w_up = jax.random.normal(ku, (I, H), dtype=jnp.float32) * (1.0 / H ** 0.5)
    w_down = jax.random.normal(kd, (H, I), dtype=jnp.float32) * (1.0 / I ** 0.5)

    # Prepare weights once (hot-path usage pattern), then run the kernel.
    wgu, wd_t, ti, _ = prepare_llama_mlp_weights(w_gate, w_up, w_down)
    out = llama_mlp_prepared(x, wgu, wd_t, ti)
    out = jax.block_until_ready(out)

    ref = reference_mlp(x, w_gate, w_up, w_down)
    assert out.shape == (B, S, H)
    assert jnp.allclose(out, ref, atol=3e-2, rtol=3e-2), "mismatch vs reference"

    print("KERNEL_OK")
</pallas_src>

<mosaic_0001>
module attributes {stable_mosaic.version = 11 : i64} {
  func.func @_llama_mlp_kernel(%arg0: i32, %arg1: i32, %arg2: memref<16x256xbf16, #tpu.memory_space<vmem>>, %arg3: memref<256x256xbf16, #tpu.memory_space<vmem>>, %arg4: memref<128x256xbf16, #tpu.memory_space<vmem>>, %arg5: memref<16x256xf32, #tpu.memory_space<vmem>>, %arg6: memref<16x256xf32, #tpu.memory_space<vmem>>) attributes {dimension_semantics = [#tpu.dimension_semantics<parallel>, #tpu.dimension_semantics<arbitrary>], iteration_bounds = array<i64: 1, 3>, scalar_prefetch = 0 : i64, scratch_operands = 1 : i64, tpu.core_type = #tpu.core_type<tc>, window_params = [{transform_indices = @transform_0, window_bounds = array<i64: 16, 256>}, {transform_indices = @transform_1, window_bounds = array<i64: 256, 256>}, {transform_indices = @transform_2, window_bounds = array<i64: 128, 256>}, {transform_indices = @transform_3, window_bounds = array<i64: 16, 256>}]} {
    %c0_i32 = arith.constant 0 : i32
    %0 = arith.cmpi eq, %arg1, %c0_i32 : i32
    %1 = arith.extui %0 : i1 to i32
    %c0_i32_0 = arith.constant 0 : i32
    %2 = arith.cmpi ne, %1, %c0_i32_0 : i32
    scf.if %2 {
      %cst_13 = arith.constant 0.000000e+00 : f32
      %24 = vector.broadcast %cst_13 : f32 to vector<16x256xf32>
      %c0_14 = arith.constant 0 : index
      %c0_15 = arith.constant 0 : index
      %25 = vector.load %arg6[%c0_14, %c0_15] : memref<16x256xf32, #tpu.memory_space<vmem>>, vector<16x256xf32>
      tpu.vector_store %arg6[%c0_14, %c0_15], %24 {strides = array<i32>} : memref<16x256xf32, #tpu.memory_space<vmem>>, vector<16x256xf32>,
    } else {
    }
    %c0 = arith.constant 0 : index
    %c0_1 = arith.constant 0 : index
    %3 = vector.load %arg2[%c0, %c0_1] : memref<16x256xbf16, #tpu.memory_space<vmem>>, vector<16x256xbf16>
    %c0_2 = arith.constant 0 : index
    %c0_3 = arith.constant 0 : index
    %4 = vector.load %arg3[%c0_2, %c0_3] : memref<256x256xbf16, #tpu.memory_space<vmem>>, vector<256x256xbf16>
    %c0_4 = arith.constant 0 : index
    %c0_5 = arith.constant 0 : index
    %5 = vector.load %arg4[%c0_4, %c0_5] : memref<128x256xbf16, #tpu.memory_space<vmem>>, vector<128x256xbf16>
    %cst = arith.constant dense<0.000000e+00> : vector<16x256xf32>
    %6 = tpu.matmul %3, %4, %cst {dimension_numbers = #tpu.dot_dimension_numbers<[1], [0], [0], [1], [0, 0, 1, 1], [], []>} : vector<16x256xbf16>, vector<256x256xbf16>, vector<16x256xf32> -> vector<16x256xf32>
    %7 = vector.extract_strided_slice %6 {offsets = [0, 0], sizes = [16, 128], strides = [1, 1]} : vector<16x256xf32> to vector<16x128xf32>
    %8 = vector.extract_strided_slice %6 {offsets = [0, 128], sizes = [16, 128], strides = [1, 1]} : vector<16x256xf32> to vector<16x128xf32>
    %9 = arith.negf %7 : vector<16x128xf32>
    %10 = math.exp %9 : vector<16x128xf32>
    %cst_6 = arith.constant 1.000000e+00 : f32
    %11 = vector.broadcast %cst_6 : f32 to vector<16x128xf32>
    %12 = arith.addf %11, %10 : vector<16x128xf32>
    %13 = arith.divf %11, %12 : vector<16x128xf32>
    %14 = arith.mulf %7, %13 : vector<16x128xf32>
    %15 = arith.mulf %14, %8 : vector<16x128xf32>
    %c0_7 = arith.constant 0 : index
    %c0_8 = arith.constant 0 : index
    %16 = vector.load %arg6[%c0_7, %c0_8] : memref<16x256xf32, #tpu.memory_space<vmem>>, vector<16x256xf32>
    %17 = arith.truncf %15 : vector<16x128xf32> to vector<16x128xbf16>
    %cst_9 = arith.constant dense<0.000000e+00> : vector<16x256xf32>
    %18 = tpu.matmul %17, %5, %cst_9 {dimension_numbers = #tpu.dot_dimension_numbers<[1], [0], [0], [1], [0, 0, 1, 1], [], []>} : vector<16x128xbf16>, vector<128x256xbf16>, vector<16x256xf32> -> vector<16x256xf32>
    %19 = arith.addf %16, %18 : vector<16x256xf32>
    %c0_10 = arith.constant 0 : index
    %c0_11 = arith.constant 0 : index
    %20 = vector.load %arg6[%c0_10, %c0_11] : memref<16x256xf32, #tpu.memory_space<vmem>>, vector<16x256xf32>
    tpu.vector_store %arg6[%c0_10, %c0_11], %19 {strides = array<i32>} : memref<16x256xf32, #tpu.memory_space<vmem>>, vector<16x256xf32>,
    %c2_i32 = arith.constant 2 : i32
    %21 = arith.cmpi eq, %arg1, %c2_i32 : i32
    %22 = arith.extui %21 : i1 to i32
    %c0_i32_12 = arith.constant 0 : i32
    %23 = arith.cmpi ne, %22, %c0_i32_12 : i32
    scf.if %23 {
      %c0_13 = arith.constant 0 : index
      %c0_14 = arith.constant 0 : index
      %24 = vector.load %arg5[%c0_13, %c0_14] : memref<16x256xf32, #tpu.memory_space<vmem>>, vector<16x256xf32>
      tpu.vector_store %arg5[%c0_13, %c0_14], %19 {strides = array<i32>} : memref<16x256xf32, #tpu.memory_space<vmem>>, vector<16x256xf32>,
    } else {
    }
    return
  }
  func.func @transform_0(%arg0: i32, %arg1: i32) -> (i32, i32) {
    %c0_i32 = arith.constant 0 : i32
    %c0_i32_0 = arith.constant 0 : i32
    return %arg0, %c0_i32 : i32, i32
  }
  func.func @transform_1(%arg0: i32, %arg1: i32) -> (i32, i32) {
    %c0_i32 = arith.constant 0 : i32
    %c0_i32_0 = arith.constant 0 : i32
    return %c0_i32, %arg1 : i32, i32
  }
  func.func @transform_2(%arg0: i32, %arg1: i32) -> (i32, i32) {
    %c0_i32 = arith.constant 0 : i32
    %c0_i32_0 = arith.constant 0 : i32
    return %arg1, %c0_i32 : i32, i32
  }
  func.func @transform_3(%arg0: i32, %arg1: i32) -> (i32, i32) {
    %c0_i32 = arith.constant 0 : i32
    %c0_i32_0 = arith.constant 0 : i32
    return %arg0, %c0_i32 : i32, i32
  }
}

</mosaic_0001>

<llo_original>
// kernel: tpu_custom_call.1
$region0: #{tpu_custom_call.1}
  #allocation0 [shape = 'u32[]', space=smem, size = 0x4, offset = 0x4, fixed_abs, tag = 'smem constant byte address 0x4 - core index']
  #allocation1 [shape = 'u32[144,128]{1,0:T(1,128)}', space=vmem, size = 0x12000, scoped, tag = 'internal scratch']
  #allocation2 [shape = 'f32[16,256]{1,0:T(8,128)}', space=vmem, size = 0x4000, scoped, tag = 'scratch operand']
  %s0 = inlined_call_operand.hbm [shape: bf16[16,256], index: 0, kind: input, shape index: {}]
  %s1 = inlined_call_operand.hbm [shape: bf16[256,768], index: 1, kind: input, shape index: {}]
  %s2 = inlined_call_operand.hbm [shape: bf16[384,256], index: 2, kind: input, shape index: {}]
  %s3 = inlined_call_operand.hbm [shape: f32[16,256], index: 3, kind: output, shape index: {}]
  %s4 = sld [smem:[#allocation0]]
  $region65: #{tpu_custom_call.1} parent=0
    _
  %s6 = ssub.s32 1, %s4
  %s7 = scalar_select 0, %s6, %s4
  $region1: #{tpu_custom_call.1} parent=0
    #allocation3 [shape = 'u8[8192]{0}', space=vmem, size = 0x2000, scoped, tag = 'input window, operand 0, single buffered']
    #allocation4 [shape = 's32[2]{0}', space=sflag, size = 0x8, scoped, tag = 'scoped memory for tpu_custom_call.1']
    #allocation5 [shape = 's32[2]{0}', space=sflag, size = 0x8, scoped, tag = 'scoped memory for tpu_custom_call.1']
    #allocation6 [shape = 'u8[262144]{0}', space=vmem, size = 0x40000, scoped, tag = 'input window, operand 1']
    #allocation7 [shape = 's32[2]{0}', space=sflag, size = 0x8, scoped, tag = 'scoped memory for tpu_custom_call.1']
    #allocation8 [shape = 'u8[131072]{0}', space=vmem, size = 0x20000, scoped, tag = 'input window, operand 2']
    #allocation9 [shape = 'u8[16384]{0}', space=vmem, size = 0x4000, scoped, tag = 'output window, operand 0, single buffered']
    %8 = vsyncpa [#allocation4], 0
    %9 = vsyncpa [#allocation7], 0
    %s10 = scalar_lea.sflag [#allocation7], 1
    %11 = vsyncpa %s10, 0
    %12 = vsyncpa [#allocation5], 0
    loop: start=0, step=1, limit=5
    $region2: #{tpu_custom_call.1} parent=1 // loop_pre_header
      _
    $region3: #{tpu_custom_call.1} parent=1 // loop_header
      %s14 = sphi 0, %s18
      %p15 = scmp.ge.s32.totalorder %s14, 5
      %s21 = sphi 0, %s33
      %s22 = sphi 0, %s29
      %s23 = sphi 0, %s21
      %s24 = sphi 0, %s22
      %s25 = sphi 0, %s23
      %s26 = sphi 0, %s24
      %s36 = sphi 0, %s38
      %s39 = sphi 0, %s36
      %s40 = sphi 0, %s39
      %s56 = sphi 0, %s40
      %s62 = sphi 0, %s64
      %s65 = sphi 0, %s62
      %s66 = sphi 0, %s65
      %s82 = sphi 0, %s66
      %s88 = sphi 0, %s90
      %s91 = sphi 0, %s88
      %s92 = sphi 0, %s91
      %s108 = sphi 0, %s92
      %s114 = sphi 0, %s116
      %s117 = sphi 0, %s114
      %s118 = sphi 0, %s117
      %s134 = sphi 0, %s118
    $region4: #{tpu_custom_call.1} parent=1 // loop_header_branch
      %17 = sbr.rel (%p15) target = $region8
    $region5: #{tpu_custom_call.1} parent=1 // loop_body
      %s19 = ssub.s32 %s14, 1
      %s20 = ssub.s32 %s14, 2
      %s27 = sadd.s32 1, %s22
      %p28 = scmp.ge.s32.totalorder %s27, 3
      %s29 = scalar_select %p28, 0, %s27
      %s30 = sadd.s32 1, %s21
      %s31 = scalar_select %p28, %s30, %s21
      %p32 = scmp.ge.s32.totalorder %s31, 1
      %s33 = scalar_select %p32, 0, %s31
      %s34 = ssub.s32 %s21, %s33
      %p35 = scmp.eq.s32.totalorder %s34, 0
      %s37 = sadd.s32 %s36, 1
      %s38 = scalar_select %p35, %s36, %s37
      %p41 = pneg %p35
      %p42 = scmp.eq.s32.totalorder %s14, 2
      %p43 = por %p41, %p42
      %p44 = scmp.ne.s32.totalorder %s36, %s39
      %p45 = scmp.eq.s32.totalorder %s14, 0
      %p46 = por %p44, %p45
      %p47 = scmp.ne.s32.totalorder %s36, %s39
      %p48 = scmp.eq.s32.totalorder %s19, 2
      %p49 = por %p47, %p48
      %p50 = scmp.ne.s32.totalorder %s39, %s40
      %p51 = scmp.eq.s32.totalorder %s19, 0
      %p52 = por %p50, %p51
      %p53 = scmp.ne.s32.totalorder %s39, %s40
      %p54 = scmp.eq.s32.totalorder %s20, 2
      %p55 = por %p53, %p54
      %p57 = scmp.ne.s32.totalorder %s40, %s56
      %p58 = scmp.eq.s32.totalorder %s20, 0
      %p59 = por %p57, %p58
      %s60 = ssub.s32 %s22, %s29
      %p61 = scmp.eq.s32.totalorder %s60, 0
      %s63 = sadd.s32 %s62, 1
      %s64 = scalar_select %p61, %s62, %s63
      %p67 = pneg %p61
      %p68 = scmp.eq.s32.totalorder %s14, 2
      %p69 = por %p67, %p68
      %p70 = scmp.ne.s32.totalorder %s62, %s65
      %p71 = scmp.eq.s32.totalorder %s14, 0
      %p72 = por %p70, %p71
      %p73 = scmp.ne.s32.totalorder %s62, %s65
      %p74 = scmp.eq.s32.totalorder %s19, 2
      %p75 = por %p73, %p74
      %p76 = scmp.ne.s32.totalorder %s65, %s66
      %p77 = scmp.eq.s32.totalorder %s19, 0
      %p78 = por %p76, %p77
      %p79 = scmp.ne.s32.totalorder %s65, %s66
      %p80 = scmp.eq.s32.totalorder %s20, 2
      %p81 = por %p79, %p80
      %p83 = scmp.ne.s32.totalorder %s66, %s82
      %p84 = scmp.eq.s32.totalorder %s20, 0
      %p85 = por %p83, %p84
      %s86 = ssub.s32 %s22, %s29
      %p87 = scmp.eq.s32.totalorder %s86, 0
      %s89 = sadd.s32 %s88, 1
      %s90 = scalar_select %p87, %s88, %s89
      %p93 = pneg %p87
      %p94 = scmp.eq.s32.totalorder %s14, 2
      %p95 = por %p93, %p94
      %p96 = scmp.ne.s32.totalorder %s88, %s91
      %p97 = scmp.eq.s32.totalorder %s14, 0
      %p98 = por %p96, %p97
      %p99 = scmp.ne.s32.totalorder %s88, %s91
      %p100 = scmp.eq.s32.totalorder %s19, 2
      %p101 = por %p99, %p100
      %p102 = scmp.ne.s32.totalorder %s91, %s92
      %p103 = scmp.eq.s32.totalorder %s19, 0
      %p104 = por %p102, %p103
      %p105 = scmp.ne.s32.totalorder %s91, %s92
      %p106 = scmp.eq.s32.totalorder %s20, 2
      %p107 = por %p105, %p106
      %p109 = scmp.ne.s32.totalorder %s92, %s108
      %p110 = scmp.eq.s32.totalorder %s20, 0
      %p111 = por %p109, %p110
      %s112 = ssub.s32 %s21, %s33
      %p113 = scmp.eq.s32.totalorder %s112, 0
      %s115 = sadd.s32 %s114, 1
      %s116 = scalar_select %p113, %s114, %s115
      %p119 = pneg %p113
      %p120 = scmp.eq.s32.totalorder %s14, 2
      %p121 = por %p119, %p120
      %p122 = scmp.ne.s32.totalorder %s114, %s117
      %p123 = scmp.eq.s32.totalorder %s14, 0
      %p124 = por %p122, %p123
      %p125 = scmp.ne.s32.totalorder %s114, %s117
      %p126 = scmp.eq.s32.totalorder %s19, 2
      %p127 = por %p125, %p126
      %p128 = scmp.ne.s32.totalorder %s117, %s118
      %p129 = scmp.eq.s32.totalorder %s19, 0
      %p130 = por %p128, %p129
      %p131 = scmp.ne.s32.totalorder %s117, %s118
      %p132 = scmp.eq.s32.totalorder %s20, 2
      %p133 = por %p131, %p132
      %p135 = scmp.ne.s32.totalorder %s118, %s134
      %p136 = scmp.eq.s32.totalorder %s20, 0
      %p137 = por %p135, %p136
      %p138 = scmp.le.s32.totalorder 1, %s14
      %p139 = scmp.lt.s32.totalorder %s14, 4
      %p140 = pnand %p138, %p139
      %p141 = pneg %p140
      // Predicated region
      $region9: #{tpu_custom_call.1} parent=5 // pred_check
        _
      $region10: #{tpu_custom_call.1} parent=5 // pred_check_branch
        %143 = sbr.rel (%p140) target = $region12
      $region11: #{tpu_custom_call.1} parent=5 // pred_region
        %s144 = ssub.s32 %s14, 1
        // Predicated region
        $region13: #{tpu_custom_call.1} parent=11 // pred_check
          %p145 = pneg %p52
        $region14: #{tpu_custom_call.1} parent=11 // pred_check_branch
          %147 = sbr.rel (%p145) target = $region16
        $region15: #{tpu_custom_call.1} parent=11 // pred_region
          %s148 = smul.u32 2, %s23
          %s150 = ssub.s32 256, 256
          %151 = vsyncadd [#allocation4], %s150
          %s152 = smul.addr %s148, 2
          %s153 = smul.addr %s152, 64
          %s154 = scalar_lea.hbm %s0, %s153
          %s155 = sshll.u32 [#allocation3], 4
          %s156 = int_to_ptr.vmem [resolvable:$true] %s155
          %161 = dma.hbm_to_vmem [thread:$0]  %s154, 256, %s156, [#allocation4], 128, 128, 8
        $region16: #{tpu_custom_call.1} parent=11 // pred_fallthru
          _
      $region12: #{tpu_custom_call.1} parent=5 // pred_fallthru
        _
      %p162 = scmp.lt.s32.totalorder %s14, 3
      // Predicated region
      $region17: #{tpu_custom_call.1} parent=5 // pred_check
        %p163 = pneg %p162
      $region18: #{tpu_custom_call.1} parent=5 // pred_check_branch
        %165 = sbr.rel (%p163) target = $region20
      $region19: #{tpu_custom_call.1} parent=5 // pred_region
        // Predicated region
        $region21: #{tpu_custom_call.1} parent=19 // pred_check
          %p166 = pneg %p72
        $region22: #{tpu_custom_call.1} parent=19 // pred_check_branch
          %168 = sbr.rel (%p166) target = $region24
        $region23: #{tpu_custom_call.1} parent=19 // pred_region
          %s169 = sand.u32 %s14, 1
          %s170 = scalar_lea.sflag [#allocation7], %s169
          %s171 = sand.u32 %s62, 1
          %s172 = smul.addr %s171, 256
          %s173 = scalar_lea.vmem [#allocation6], %s172
          %s174 = smul.u32 2, %s22
          %s176 = ssub.s32 4096, 4096
          %177 = vsyncadd %s170, %s176
          %s178 = smul.addr %s174, 64
          %s179 = scalar_lea.hbm %s1, %s178
          %s180 = sshll.u32 %s173, 4
          %s181 = int_to_ptr.vmem [resolvable:$true] %s180
          %186 = dma.hbm_to_vmem [thread:$0]  %s179, 4096, %s181, %s170, 384, 128, 8
        $region24: #{tpu_custom_call.1} parent=19 // pred_fallthru
          _
        // Predicated region
        $region25: #{tpu_custom_call.1} parent=19 // pred_check
          %p187 = pneg %p98
        $region26: #{tpu_custom_call.1} parent=19 // pred_check_branch
          %189 = sbr.rel (%p187) target = $region28
        $region27: #{tpu_custom_call.1} parent=19 // pred_region
          %s190 = sand.u32 %s14, 1
          %s191 = scalar_lea.sflag [#allocation7], %s190
          %s192 = sand.u32 %s88, 1
          %s193 = smul.addr %s192, 128
          %s194 = scalar_lea.vmem [#allocation8], %s193
          %s195 = smul.u32 16, %s22
          %s197 = ssub.s32 2048, 2048
          %198 = vsyncadd %s191, %s197
          %s199 = smul.addr %s195, 2
          %s200 = smul.addr %s199, 64
          %s201 = scalar_lea.hbm %s2, %s200
          %s202 = sshll.u32 %s194, 4
          %s203 = int_to_ptr.vmem [resolvable:$true] %s202
          %208 = dma.hbm_to_vmem [thread:$0]  %s201, 2048, %s203, %s191, 128, 128, 8
        $region28: #{tpu_custom_call.1} parent=19 // pred_fallthru
          _
      $region20: #{tpu_custom_call.1} parent=5 // pred_fallthru
        _
      %p209 = scmp.le.s32.totalorder 1, %s14
      %p210 = scmp.lt.s32.totalorder %s14, 4
      %p211 = pnand %p209, %p210
      %p212 = pneg %p211
      // Predicated region
      $region29: #{tpu_custom_call.1} parent=5 // pred_check
        _
      $region30: #{tpu_custom_call.1} parent=5 // pred_check_branch
        %214 = sbr.rel (%p211) target = $region32
      $region31: #{tpu_custom_call.1} parent=5 // pred_region
        %s215 = ssub.s32 %s14, 1
        // Predicated region
        $region33: #{tpu_custom_call.1} parent=31 // pred_check
          %p216 = pneg %p52
        $region34: #{tpu_custom_call.1} parent=31 // pred_check_branch
          %218 = sbr.rel (%p216) target = $region36
        $region35: #{tpu_custom_call.1} parent=31 // pred_region
          %219 = dma.done [#allocation4], 256
        $region36: #{tpu_custom_call.1} parent=31 // pred_fallthru
          _
        %s220 = sand.u32 %s19, 1
        %s221 = scalar_lea.sflag [#allocation7], %s220
        %s222 = sand.u32 %s65, 1
        %s223 = smul.addr %s222, 256
        %s224 = scalar_lea.vmem [#allocation6], %s223
        // Predicated region
        $region37: #{tpu_custom_call.1} parent=31 // pred_check
          %p225 = pneg %p78
        $region38: #{tpu_custom_call.1} parent=31 // pred_check_branch
          %227 = sbr.rel (%p225) target = $region40
        $region39: #{tpu_custom_call.1} parent=31 // pred_region
          %228 = dma.done %s221, 4096
        $region40: #{tpu_custom_call.1} parent=31 // pred_fallthru
          _
        %s229 = sand.u32 %s19, 1
        %s230 = scalar_lea.sflag [#allocation7], %s229
        %s231 = sand.u32 %s91, 1
        %s232 = smul.addr %s231, 128
        %s233 = scalar_lea.vmem [#allocation8], %s232
        // Predicated region
        $region41: #{tpu_custom_call.1} parent=31 // pred_check
          %p234 = pneg %p104
        $region42: #{tpu_custom_call.1} parent=31 // pred_check_branch
          %236 = sbr.rel (%p234) target = $region44
        $region43: #{tpu_custom_call.1} parent=31 // pred_region
          %237 = dma.done %s230, 2048
        $region44: #{tpu_custom_call.1} parent=31 // pred_fallthru
          _
        %p238 = pneg %p52
        %p239 = pneg %p49
        %s240 = sand.u32 %s19, 1
        %s241 = scalar_lea.sflag [#allocation7], %s240
        %s242 = sand.u32 %s65, 1
        %s243 = smul.addr %s242, 256
        %s244 = scalar_lea.vmem [#allocation6], %s243
        %p245 = pneg %p78
        %p246 = pneg %p75
        %s247 = sand.u32 %s19, 1
        %s248 = scalar_lea.sflag [#allocation7], %s247
        %s249 = sand.u32 %s91, 1
        %s250 = smul.addr %s249, 128
        %s251 = scalar_lea.vmem [#allocation8], %s250
        %p252 = pneg %p104
        %p253 = pneg %p101
        %p254 = pneg %p130
        %p255 = pneg %p127
        %s256 = smul.u32 2, %s23
        %s257 = smul.u32 2, %s24
        %s258 = smul.u32 16, %s24
        %s259 = smul.u32 2, %s23
        %p261 = scmp.eq.s32.totalorder %s24, 0
        // Predicated region
        $region45: #{tpu_custom_call.1} parent=31 // pred_check
          %p262 = pneg %p261
        $region46: #{tpu_custom_call.1} parent=31 // pred_check_branch
          %264 = sbr.rel (%p262) target = $region48
        $region47: #{tpu_custom_call.1} parent=31 // pred_region
          %265 = vst [vmem:[#allocation2] sm:$0xff] 0.0
          %266 = vst [vmem:[#allocation2 + $0x8] sm:$0xff] 0.0
          %267 = vst [vmem:[#allocation2 + $0x10] sm:$0xff] 0.0
          %268 = vst [vmem:[#allocation2 + $0x18] sm:$0xff] 0.0
        $region48: #{tpu_custom_call.1} parent=31 // pred_fallthru
          _
        %v269 = vld [vmem:[#allocation3] sm:$0xff]
        %v270 = vld [vmem:[#allocation3 + $0x8] sm:$0xff]
        %v271 = vld [vmem:[%s224] sm:$0xff]
        %v272 = vld [vmem:[%s224 + $0x8] sm:$0xff]
        %v273 = vld [vmem:[%s224 + $0x10] sm:$0xff]
        %v274 = vld [vmem:[%s224 + $0x18] sm:$0xff]
        %v275 = vld [vmem:[%s224 + $0x20] sm:$0xff]
        %v276 = vld [vmem:[%s224 + $0x28] sm:$0xff]
        %v277 = vld [vmem:[%s224 + $0x30] sm:$0xff]
        %v278 = vld [vmem:[%s224 + $0x38] sm:$0xff]
        %v279 = vld [vmem:[%s224 + $0x40] sm:$0xff]
        %v280 = vld [vmem:[%s224 + $0x48] sm:$0xff]
        %v281 = vld [vmem:[%s224 + $0x50] sm:$0xff]
        %v282 = vld [vmem:[%s224 + $0x58] sm:$0xff]
        %v283 = vld [vmem:[%s224 + $0x60] sm:$0xff]
        %v284 = vld [vmem:[%s224 + $0x68] sm:$0xff]
        %v285 = vld [vmem:[%s224 + $0x70] sm:$0xff]
        %v286 = vld [vmem:[%s224 + $0x78] sm:$0xff]
        %v287 = vld [vmem:[%s224 + $0x80] sm:$0xff]
        %v288 = vld [vmem:[%s224 + $0x88] sm:$0xff]
        %v289 = vld [vmem:[%s224 + $0x90] sm:$0xff]
        %v290 = vld [vmem:[%s224 + $0x98] sm:$0xff]
        %v291 = vld [vmem:[%s224 + $0xa0] sm:$0xff]
        %v292 = vld [vmem:[%s224 + $0xa8] sm:$0xff]
        %v293 = vld [vmem:[%s224 + $0xb0] sm:$0xff]
        %v294 = vld [vmem:[%s224 + $0xb8] sm:$0xff]
        %v295 = vld [vmem:[%s224 + $0xc0] sm:$0xff]
        %v296 = vld [vmem:[%s224 + $0xc8] sm:$0xff]
        %v297 = vld [vmem:[%s224 + $0xd0] sm:$0xff]
        %v298 = vld [vmem:[%s224 + $0xd8] sm:$0xff]
        %v299 = vld [vmem:[%s224 + $0xe0] sm:$0xff]
        %v300 = vld [vmem:[%s224 + $0xe8] sm:$0xff]
        %v301 = vld [vmem:[%s224 + $0xf0] sm:$0xff]
        %v302 = vld [vmem:[%s224 + $0xf8] sm:$0xff]
        %v303 = vld [vmem:[%s233] sm:$0xff]
        %v304 = vld [vmem:[%s233 + $0x8] sm:$0xff]
        %v305 = vld [vmem:[%s233 + $0x10] sm:$0xff]
        %v306 = vld [vmem:[%s233 + $0x18] sm:$0xff]
        %v307 = vld [vmem:[%s233 + $0x20] sm:$0xff]
        %v308 = vld [vmem:[%s233 + $0x28] sm:$0xff]
        %v309 = vld [vmem:[%s233 + $0x30] sm:$0xff]
        %v310 = vld [vmem:[%s233 + $0x38] sm:$0xff]
        %v311 = vld [vmem:[%s233 + $0x40] sm:$0xff]
        %v312 = vld [vmem:[%s233 + $0x48] sm:$0xff]
        %v313 = vld [vmem:[%s233 + $0x50] sm:$0xff]
        %v314 = vld [vmem:[%s233 + $0x58] sm:$0xff]
        %v315 = vld [vmem:[%s233 + $0x60] sm:$0xff]
        %v316 = vld [vmem:[%s233 + $0x68] sm:$0xff]
        %v317 = vld [vmem:[%s233 + $0x70] sm:$0xff]
        %v318 = vld [vmem:[%s233 + $0x78] sm:$0xff]
        %v321 = vunpack.c.l.b16 %v269
        %v322 = vunpack.c.h.b16 %v269
        %v323 = vunpack.c.l.b16 %v270
        %v324 = vunpack.c.h.b16 %v270
        %v325 = vpack.c.b16 %v323, %v321
        %v326 = vpack.c.b16 %v324, %v322
        %v361 = vunpack.c.l.b16 %v271
        %v362 = vunpack.c.h.b16 %v271
        %v363 = vunpack.c.l.b16 %v272
        %v364 = vunpack.c.h.b16 %v272
        %v365 = vunpack.c.l.b16 %v273
        %v366 = vunpack.c.h.b16 %v273
        %v367 = vunpack.c.l.b16 %v274
        %v368 = vunpack.c.h.b16 %v274
        %v369 = vunpack.c.l.b16 %v275
        %v370 = vunpack.c.h.b16 %v275
        %v371 = vunpack.c.l.b16 %v276
        %v372 = vunpack.c.h.b16 %v276
        %v373 = vunpack.c.l.b16 %v277
        %v374 = vunpack.c.h.b16 %v277
        %v375 = vunpack.c.l.b16 %v278
        %v376 = vunpack.c.h.b16 %v278
        %v377 = vunpack.c.l.b16 %v279
        %v378 = vunpack.c.h.b16 %v279
        %v379 = vunpack.c.l.b16 %v280
        %v380 = vunpack.c.h.b16 %v280
        %v381 = vunpack.c.l.b16 %v281
        %v382 = vunpack.c.h.b16 %v281
        %v383 = vunpack.c.l.b16 %v282
        %v384 = vunpack.c.h.b16 %v282
        %v385 = vunpack.c.l.b16 %v283
        %v386 = vunpack.c.h.b16 %v283
        %v387 = vunpack.c.l.b16 %v284
        %v388 = vunpack.c.h.b16 %v284
        %v389 = vunpack.c.l.b16 %v285
        %v390 = vunpack.c.h.b16 %v285
        %v391 = vunpack.c.l.b16 %v286
        %v392 = vunpack.c.h.b16 %v286
        %v393 = vunpack.c.l.b16 %v287
        %v394 = vunpack.c.h.b16 %v287
        %v395 = vunpack.c.l.b16 %v288
        %v396 = vunpack.c.h.b16 %v288
        %v397 = vunpack.c.l.b16 %v289
        %v398 = vunpack.c.h.b16 %v289
        %v399 = vunpack.c.l.b16 %v290
        %v400 = vunpack.c.h.b16 %v290
        %v401 = vunpack.c.l.b16 %v291
        %v402 = vunpack.c.h.b16 %v291
        %v403 = vunpack.c.l.b16 %v292
        %v404 = vunpack.c.h.b16 %v292
        %v405 = vunpack.c.l.b16 %v293
        %v406 = vunpack.c.h.b16 %v293
        %v407 = vunpack.c.l.b16 %v294
        %v408 = vunpack.c.h.b16 %v294
        %v409 = vunpack.c.l.b16 %v295
        %v410 = vunpack.c.h.b16 %v295
        %v411 = vunpack.c.l.b16 %v296
        %v412 = vunpack.c.h.b16 %v296
        %v413 = vunpack.c.l.b16 %v297
        %v414 = vunpack.c.h.b16 %v297
        %v415 = vunpack.c.l.b16 %v298
        %v416 = vunpack.c.h.b16 %v298
        %v417 = vunpack.c.l.b16 %v299
        %v418 = vunpack.c.h.b16 %v299
        %v419 = vunpack.c.l.b16 %v300
        %v420 = vunpack.c.h.b16 %v300
        %v421 = vunpack.c.l.b16 %v301
        %v422 = vunpack.c.h.b16 %v301
        %v423 = vunpack.c.l.b16 %v302
        %v424 = vunpack.c.h.b16 %v302
        %v425 = vpack.c.b16 %v363, %v361
        %v426 = vpack.c.b16 %v364, %v362
        %v427 = vpack.c.b16 %v367, %v365
        %v428 = vpack.c.b16 %v368, %v366
        %v429 = vpack.c.b16 %v371, %v369
        %v430 = vpack.c.b16 %v372, %v370
        %v431 = vpack.c.b16 %v375, %v373
        %v432 = vpack.c.b16 %v376, %v374
        %v433 = vpack.c.b16 %v379, %v377
        %v434 = vpack.c.b16 %v380, %v378
        %v435 = vpack.c.b16 %v383, %v381
        %v436 = vpack.c.b16 %v384, %v382
        %v437 = vpack.c.b16 %v387, %v385
        %v438 = vpack.c.b16 %v388, %v386
        %v439 = vpack.c.b16 %v391, %v389
        %v440 = vpack.c.b16 %v392, %v390
        %v441 = vpack.c.b16 %v395, %v393
        %v442 = vpack.c.b16 %v396, %v394
        %v443 = vpack.c.b16 %v399, %v397
        %v444 = vpack.c.b16 %v400, %v398
        %v445 = vpack.c.b16 %v403, %v401
        %v446 = vpack.c.b16 %v404, %v402
        %v447 = vpack.c.b16 %v407, %v405
        %v448 = vpack.c.b16 %v408, %v406
        %v449 = vpack.c.b16 %v411, %v409
        %v450 = vpack.c.b16 %v412, %v410
        %v451 = vpack.c.b16 %v415, %v413
        %v452 = vpack.c.b16 %v416, %v414
        %v453 = vpack.c.b16 %v419, %v417
        %v454 = vpack.c.b16 %v420, %v418
        %v455 = vpack.c.b16 %v423, %v421
        %v456 = vpack.c.b16 %v424, %v422
        %489 = vmatprep.subr.bf16.mxu0 %v426
        %490 = vmatpush1.bf16.msra.mxu0 %v425
        %491 = vmatprep.subr.bf16.mxu0 %v428
        %492 = vmatpush1.bf16.msra.mxu0 %v427
        %493 = vmatprep.subr.bf16.mxu0 %v430
        %494 = vmatpush1.bf16.msra.mxu0 %v429
        %495 = vmatprep.subr.bf16.mxu0 %v432
        %496 = vmatpush1.bf16.msra.mxu0 %v431
        %497 = vmatprep.subr.bf16.mxu0 %v434
        %498 = vmatpush1.bf16.msra.mxu0 %v433
        %499 = vmatprep.subr.bf16.mxu0 %v436
        %500 = vmatpush1.bf16.msra.mxu0 %v435
        %501 = vmatprep.subr.bf16.mxu0 %v438
        %502 = vmatpush1.bf16.msra.mxu0 %v437
        %503 = vmatprep.subr.bf16.mxu0 %v440
        %504 = vmatpush1.bf16.msra.mxu0 %v439
        %505 = vmatprep.subr.bf16.mxu0 %v442
        %506 = vmatpush1.bf16.msra.mxu0 %v441
        %507 = vmatprep.subr.bf16.mxu0 %v444
        %508 = vmatpush1.bf16.msra.mxu0 %v443
        %509 = vmatprep.subr.bf16.mxu0 %v446
        %510 = vmatpush1.bf16.msra.mxu0 %v445
        %511 = vmatprep.subr.bf16.mxu0 %v448
        %512 = vmatpush1.bf16.msra.mxu0 %v447
        %513 = vmatprep.subr.bf16.mxu0 %v450
        %514 = vmatpush1.bf16.msra.mxu0 %v449
        %515 = vmatprep.subr.bf16.mxu0 %v452
        %516 = vmatpush1.bf16.msra.mxu0 %v451
        %517 = vmatprep.subr.bf16.mxu0 %v454
        %518 = vmatpush1.bf16.msra.mxu0 %v453
        %519 = vmatprep.subr.bf16.mxu0 %v456
        %520 = vmatpush1.bf16.msra.mxu0 %v455
        %521 = vmatprep.mubr.bf16.mxu0 %v326
        %522 = vmatmul.mubr.bf16.gmra.mrb[0].mxu0 %v325
        %v523 = vpop.f32.mrb[0].mxu0
        %v524 = vadd.f32 0.0, %v523
        %v525 = vpop.f32.mrb[0].mxu0
        %v526 = vadd.f32 0.0, %v525
        %v527 = vpop.f32.mrb[0].mxu0
        %v528 = vadd.f32 0.0, %v527
        %v529 = vpop.f32.mrb[0].mxu0
        %v530 = vadd.f32 0.0, %v529
        %531 = vdwg.mxu0
        %v532 = vxor.u32 %v524, 2147483648
        %v533 = vxor.u32 %v528, 2147483648
        %v534 = vmul.f32 %v532, 1.442695
        %v535 = vpow.pop %v534
        %v536 = vmul.f32 %v533, 1.442695
        %v537 = vpow.pop %v536
        %v538 = vadd.f32 %v535, 1.0
        %v539 = vadd.f32 %v537, 1.0
        %v540 = vrcp.pop %v538
        %v541 = vmul.f32 1.0, %v540
        %v542 = vrcp.pop %v539
        %v543 = vmul.f32 1.0, %v542
        %v544 = vmul.f32 %v524, %v541
        %v545 = vmul.f32 %v528, %v543
        %v546 = vmul.f32 %v544, %v526
        %v547 = vmul.f32 %v545, %v530
        %v548 = vld [vmem:[#allocation2] sm:$0xff]
        %v549 = vld [vmem:[#allocation2 + $0x8] sm:$0xff]
        %v550 = vld [vmem:[#allocation2 + $0x10] sm:$0xff]
        %v551 = vld [vmem:[#allocation2 + $0x18] sm:$0xff]
        %v552 = vpack.c.bf16 %v547, %v546
        %v569 = vunpack.c.l.b16 %v303
        %v570 = vunpack.c.h.b16 %v303
        %v571 = vunpack.c.l.b16 %v304
        %v572 = vunpack.c.h.b16 %v304
        %v573 = vunpack.c.l.b16 %v305
        %v574 = vunpack.c.h.b16 %v305
        %v575 = vunpack.c.l.b16 %v306
        %v576 = vunpack.c.h.b16 %v306
        %v577 = vunpack.c.l.b16 %v307
        %v578 = vunpack.c.h.b16 %v307
        %v579 = vunpack.c.l.b16 %v308
        %v580 = vunpack.c.h.b16 %v308
        %v581 = vunpack.c.l.b16 %v309
        %v582 = vunpack.c.h.b16 %v309
        %v583 = vunpack.c.l.b16 %v310
        %v584 = vunpack.c.h.b16 %v310
        %v585 = vunpack.c.l.b16 %v311
        %v586 = vunpack.c.h.b16 %v311
        %v587 = vunpack.c.l.b16 %v312
        %v588 = vunpack.c.h.b16 %v312
        %v589 = vunpack.c.l.b16 %v313
        %v590 = vunpack.c.h.b16 %v313
        %v591 = vunpack.c.l.b16 %v314
        %v592 = vunpack.c.h.b16 %v314
        %v593 = vunpack.c.l.b16 %v315
        %v594 = vunpack.c.h.b16 %v315
        %v595 = vunpack.c.l.b16 %v316
        %v596 = vunpack.c.h.b16 %v316
        %v597 = vunpack.c.l.b16 %v317
        %v598 = vunpack.c.h.b16 %v317
        %v599 = vunpack.c.l.b16 %v318
        %v600 = vunpack.c.h.b16 %v318
        %v601 = vpack.c.b16 %v571, %v569
        %v602 = vpack.c.b16 %v572, %v570
        %v603 = vpack.c.b16 %v575, %v573
        %v604 = vpack.c.b16 %v576, %v574
        %v605 = vpack.c.b16 %v579, %v577
        %v606 = vpack.c.b16 %v580, %v578
        %v607 = vpack.c.b16 %v583, %v581
        %v608 = vpack.c.b16 %v584, %v582
        %v609 = vpack.c.b16 %v587, %v585
        %v610 = vpack.c.b16 %v588, %v586
        %v611 = vpack.c.b16 %v591, %v589
        %v612 = vpack.c.b16 %v592, %v590
        %v613 = vpack.c.b16 %v595, %v593
        %v614 = vpack.c.b16 %v596, %v594
        %v615 = vpack.c.b16 %v599, %v597
        %v616 = vpack.c.b16 %v600, %v598
        %633 = vmatprep.subr.bf16.mxu0 %v602
        %634 = vmatpush1.bf16.msra.mxu0 %v601
        %635 = vmatprep.subr.bf16.mxu0 %v604
        %636 = vmatpush1.bf16.msra.mxu0 %v603
        %637 = vmatprep.subr.bf16.mxu0 %v606
        %638 = vmatpush1.bf16.msra.mxu0 %v605
        %639 = vmatprep.subr.bf16.mxu0 %v608
        %640 = vmatpush1.bf16.msra.mxu0 %v607
        %641 = vmatprep.subr.bf16.mxu0 %v610
        %642 = vmatpush1.bf16.msra.mxu0 %v609
        %643 = vmatprep.subr.bf16.mxu0 %v612
        %644 = vmatpush1.bf16.msra.mxu0 %v611
        %645 = vmatprep.subr.bf16.mxu0 %v614
        %646 = vmatpush1.bf16.msra.mxu0 %v613
        %647 = vmatprep.subr.bf16.mxu0 %v616
        %648 = vmatpush1.bf16.msra.mxu0 %v615
        %649 = vmatprep.subr.bf16.mxu0 0
        %650 = vmatpush1.bf16.msra.mxu0 0
        %651 = vmatprep.subr.bf16.mxu0 0
        %652 = vmatpush1.bf16.msra.mxu0 0
        %653 = vmatprep.subr.bf16.mxu0 0
        %654 = vmatpush1.bf16.msra.mxu0 0
        %655 = vmatprep.subr.bf16.mxu0 0
        %656 = vmatpush1.bf16.msra.mxu0 0
        %657 = vmatprep.subr.bf16.mxu0 0
        %658 = vmatpush1.bf16.msra.mxu0 0
        %659 = vmatprep.subr.bf16.mxu0 0
        %660 = vmatpush1.bf16.msra.mxu0 0
        %661 = vmatprep.subr.bf16.mxu0 0
        %662 = vmatpush1.bf16.msra.mxu0 0
        %663 = vmatprep.subr.bf16.mxu0 0
        %664 = vmatpush1.bf16.msra.mxu0 0
        %665 = vmatprep.mubr.bf16.mxu0 0
        %666 = vmatmul.mubr.bf16.gmra.mrb[0].mxu0 %v552
        %v667 = vpop.f32.mrb[0].mxu0
        %v668 = vadd.f32 0.0, %v667
        %v669 = vpop.f32.mrb[0].mxu0
        %v670 = vadd.f32 0.0, %v669
        %v671 = vpop.f32.mrb[0].mxu0
        %v672 = vadd.f32 0.0, %v671
        %v673 = vpop.f32.mrb[0].mxu0
        %v674 = vadd.f32 0.0, %v673
        %675 = vdwg.mxu0
        %v676 = vadd.f32 %v548, %v668
        %v677 = vadd.f32 %v549, %v670
        %v678 = vadd.f32 %v550, %v672
        %v679 = vadd.f32 %v551, %v674
        %680 = vst [vmem:[#allocation2] sm:$0xff] %v676
        %681 = vst [vmem:[#allocation2 + $0x8] sm:$0xff] %v677
        %682 = vst [vmem:[#allocation2 + $0x10] sm:$0xff] %v678
        %683 = vst [vmem:[#allocation2 + $0x18] sm:$0xff] %v679
        %p684 = scmp.eq.s32.totalorder %s24, 2
        // Predicated region
        $region49: #{tpu_custom_call.1} parent=31 // pred_check
          %p685 = pneg %p684
        $region50: #{tpu_custom_call.1} parent=31 // pred_check_branch
          %687 = sbr.rel (%p685) target = $region52
        $region51: #{tpu_custom_call.1} parent=31 // pred_region
          %688 = vst [vmem:[#allocation9] sm:$0xff] %v676
          %689 = vst [vmem:[#allocation9 + $0x8] sm:$0xff] %v677
          %690 = vst [vmem:[#allocation9 + $0x10] sm:$0xff] %v678
          %691 = vst [vmem:[#allocation9 + $0x18] sm:$0xff] %v679
        $region52: #{tpu_custom_call.1} parent=31 // pred_fallthru
          _
        // Predicated region
        $region53: #{tpu_custom_call.1} parent=31 // pred_check
          %p692 = pneg %p127
        $region54: #{tpu_custom_call.1} parent=31 // pred_check_branch
          %694 = sbr.rel (%p692) target = $region56
        $region55: #{tpu_custom_call.1} parent=31 // pred_region
          %s695 = smul.u32 2, %s23
          %s697 = ssub.s32 512, 512
          %698 = vsyncadd [#allocation5], %s697
          %s699 = smul.addr %s695, 2
          %s700 = smul.addr %s699, 128
          %s701 = scalar_lea.hbm %s3, %s700
          %s702 = sshll.u32 [#allocation9], 4
          %s703 = int_to_ptr.vmem [resolvable:$true] %s702
          %708 = dma.vmem_to_hbm [thread:$0]  %s703, 512, %s701, [#allocation5], 256, 256, 16
        $region56: #{tpu_custom_call.1} parent=31 // pred_fallthru
          _
        // Predicated region
        $region57: #{tpu_custom_call.1} parent=31 // pred_check
          %p709 = pneg %p127
        $region58: #{tpu_custom_call.1} parent=31 // pred_check_branch
          %711 = sbr.rel (%p709) target = $region60
        $region59: #{tpu_custom_call.1} parent=31 // pred_region
          %712 = dma.done [#allocation5], 512
        $region60: #{tpu_custom_call.1} parent=31 // pred_fallthru
          _
      $region32: #{tpu_custom_call.1} parent=5 // pred_fallthru
        _
      %p713 = scmp.le.s32.totalorder 2, %s14
      // Predicated region
      $region61: #{tpu_custom_call.1} parent=5 // pred_check
        %p714 = pneg %p713
      $region62: #{tpu_custom_call.1} parent=5 // pred_check_branch
        %716 = sbr.rel (%p714) target = $region64
      $region63: #{tpu_custom_call.1} parent=5 // pred_region
        %s717 = ssub.s32 %s14, 2
      $region64: #{tpu_custom_call.1} parent=5 // pred_fallthru
        _
    $region6: #{tpu_custom_call.1} parent=1 // loop_footer
      %s18 = sadd.s32 1, %s14
    $region7: #{tpu_custom_call.1} parent=1 // loop_footer_branch
      %13 = sbr.rel target = $region3
    $region8: #{tpu_custom_call.1} parent=1 // loop_exit
      _
    %718 = vsyncpa [#allocation4], 1
    %s719 = scalar_lea.sflag [#allocation4], 1
    %720 = vsyncpa %s719, 1
    %721 = vsyncpa [#allocation7], 1
    %s722 = scalar_lea.sflag [#allocation7], 1
    %723 = vsyncpa %s722, 1
    %724 = vsyncpa [#allocation5], 1
    %s725 = scalar_lea.sflag [#allocation5], 1
    %726 = vsyncpa %s725, 1

</llo_original>
